<compile_context>
chip_gen: v7x
topology: tpu7x:2x2x1
jax: 0.10.0
libtpu: 0.0.40
codegen_flags: <defaults>
</compile_context>

<pallas_src>
import functools
import math

import jax
import jax.numpy as jnp
from jax.experimental import pallas as pl
from jax.experimental.pallas import tpu as pltpu


def _round_up(x, m):
    return ((x + m - 1) // m) * m


def _pick_hidden_chunk(Hp, block_h):
    """Largest multiple of 128 <= block_h that evenly divides Hp."""
    th = min(block_h, Hp)
    while Hp % th != 0:
        th -= 128
    return th


def _mlp_kernel(x_ref, w1_ref, b1_ref, w2_ref, b2_ref, o_ref, acc_ref):
    # One (batch-tile i, hidden-chunk k) step:
    #   acc += relu(x @ W1[:, chunk_k] + b1[chunk_k]) @ W2[chunk_k, :]
    # Dropout(p=0.3) is identity in eval/inference mode.
    k = pl.program_id(1)

    @pl.when(k == 0)
    def _():
        acc_ref[...] = jnp.zeros_like(acc_ref)

    # First matmul: operands may be bf16, MXU accumulation always f32.
    h = jnp.dot(x_ref[...], w1_ref[...], preferred_element_type=jnp.float32)
    # Bias + ReLU in f32 on the VPU (v5e has no bf16 VALU).
    h = jnp.maximum(h + b1_ref[...].astype(jnp.float32), 0.0)
    # TODO(synk): training-mode dropout would use pltpu.prng_seed + prng_random_bits
    #             with inverted scaling 1/(1-p); eval mode is identity.
    h = h.astype(w2_ref.dtype)  # single cast right before the second MXU pass
    acc_ref[...] += jnp.dot(h, w2_ref[...], preferred_element_type=jnp.float32)

    @pl.when(k == pl.num_programs(1) - 1)
    def _():
        o_ref[...] = (acc_ref[...] + b2_ref[...].astype(jnp.float32)).astype(o_ref.dtype)


def prepare_params(w1, b1, w2, b2, *, compute_dtype=jnp.bfloat16):
    """One-time weight padding + cast (hoisted out of the per-call path).

    Zero padding is exact: padded x columns multiply zero W1 rows; padded hidden
    columns give relu(0+0)=0 which multiply zero W2 rows; padded output columns
    are sliced off after the kernel. Biases stay f32 for the f32 elementwise path.
    """
    D_in, H = w1.shape
    D_out = w2.shape[1]
    Dk = _round_up(D_in, 128)
    Hp = _round_up(H, 128)
    Dp = _round_up(D_out, 128)
    w1p = jnp.pad(w1, ((0, Dk - D_in), (0, Hp - H))).astype(compute_dtype)
    b1p = jnp.pad(jnp.reshape(b1, (1, -1)), ((0, 0), (0, Hp - H))).astype(jnp.float32)
    w2p = jnp.pad(w2, ((0, Hp - H), (0, Dp - D_out))).astype(compute_dtype)
    b2p = jnp.pad(jnp.reshape(b2, (1, -1)), ((0, 0), (0, Dp - D_out))).astype(jnp.float32)
    return w1p, b1p, w2p, b2p


@functools.partial(jax.jit,
                   static_argnames=("d_out", "block_b", "block_h", "out_dtype"))
def mlp_forward(x, w1p, b1p, w2p, b2p, *, d_out, block_b=256, block_h=512,
                out_dtype=None):
    """x: [B, D_in]; padded params from prepare_params; returns [B, d_out]."""
    assert block_b % 8 == 0 and block_b >= 8
    assert block_h % 128 == 0
    B, D_in = x.shape
    Dk, Hp = w1p.shape
    Dp = w2p.shape[1]
    compute_dtype = w1p.dtype
    out_dtype = x.dtype if out_dtype is None else out_dtype

    # Hidden-dim ("arbitrary") chunking: weights stream chunk-by-chunk so the
    # resident footprint is O(Dk*th + th*Dp) instead of O(Dk*Hp + Hp*Dp).
    th = _pick_hidden_chunk(Hp, block_h)
    grid_h = Hp // th

    # Batch tiling: prefer 256-aligned tiles (full MXU occupancy on v6e/v7x),
    # never a tile bigger than the (8-padded) batch; pad ragged tails.
    bb = min(block_b, _round_up(B, 8))
    grid_b = pl.cdiv(B, bb)
    Bp = grid_b * bb

    xp = x
    if Bp != B or Dk != D_in:
        xp = jnp.pad(x, ((0, Bp - B), (0, Dk - D_in)))
    xp = xp.astype(compute_dtype)

    cb = jnp.dtype(compute_dtype).itemsize
    ob = jnp.dtype(out_dtype).itemsize

    # VMEM budget: double-buffered streamed W1/W2/b1 chunks and x/out tiles,
    # single-buffered b2, f32 accumulator + live hidden chunk; 2x headroom,
    # clamped to 85% of the actual chip's VMEM (v7x: 64 MiB per TensorCore).
    est = 2 * (Dk * th + th * Dp + th) * cb
    est += 2 * bb * Dk * cb + 2 * bb * Dp * ob
    est += Dp * 4 + bb * Dp * 4 + bb * th * 4
    try:
        vmem_cap = int(pltpu.get_tpu_info().vmem_capacity_bytes)
    except Exception:
        vmem_cap = 64 * 1024 * 1024  # conservative fallback (v7x floor)
    vmem_limit = int(min(int(0.85 * vmem_cap), max(32 * 1024 * 1024, 2 * est)))

    # Advisory cost hint so XLA can overlap the kernel with surrounding ops.
    cost = pl.CostEstimate(
        flops=2 * Bp * (Dk * Hp + Hp * Dp),
        transcendentals=0,
        bytes_accessed=int(Bp * Dk * cb + (Dk * Hp + Hp * Dp) * cb
                           + (Hp + Dp) * 4 + Bp * Dp * ob),
    )

    resident = pl.Buffered(1)  # b2 has a constant index_map -> single buffer

    out_padded = pl.pallas_call(
        _mlp_kernel,
        out_shape=jax.ShapeDtypeStruct((Bp, Dp), out_dtype),
        grid_spec=pltpu.PrefetchScalarGridSpec(
            num_scalar_prefetch=0,
            grid=(grid_b, grid_h),
            in_specs=[
                pl.BlockSpec((bb, Dk), lambda i, k: (i, 0)),   # x tile (held over k)
                pl.BlockSpec((Dk, th), lambda i, k: (0, k)),   # W1 hidden chunk
                pl.BlockSpec((1, th), lambda i, k: (0, k)),    # b1 hidden chunk
                pl.BlockSpec((th, Dp), lambda i, k: (k, 0)),   # W2 hidden chunk
                pl.BlockSpec((1, Dp), lambda i, k: (0, 0),
                             pipeline_mode=resident),          # b2 (constant)
            ],
            out_specs=pl.BlockSpec((bb, Dp), lambda i, k: (i, 0)),
            scratch_shapes=[pltpu.VMEM((bb, Dp), jnp.float32)],
        ),
        compiler_params=pltpu.CompilerParams(
            dimension_semantics=("parallel", "arbitrary"),
            vmem_limit_bytes=vmem_limit,
        ),
        cost_estimate=cost,
    )(xp, w1p, b1p, w2p, b2p)

    return out_padded[:B, :d_out]


def init_params(key, d_in, h, d_out, dtype=jnp.float32):
    """Deterministic init mimicking torch.nn.Linear default (uniform +/- 1/sqrt(fan_in))."""
    k1, k2, k3, k4 = jax.random.split(key, 4)
    lim1 = 1.0 / math.sqrt(d_in)
    lim2 = 1.0 / math.sqrt(h)
    w1 = jax.random.uniform(k1, (d_in, h), dtype, -lim1, lim1)   # pre-transposed
    b1 = jax.random.uniform(k2, (1, h), dtype, -lim1, lim1)
    w2 = jax.random.uniform(k3, (h, d_out), dtype, -lim2, lim2)  # pre-transposed
    b2 = jax.random.uniform(k4, (1, d_out), dtype, -lim2, lim2)
    return w1, b1, w2, b2


if __name__ == "__main__":
    key = jax.random.PRNGKey(0)
    kx, kp = jax.random.split(key)

    # Small demo: non-128 D_in and D_out exercise the K/output padding paths,
    # H=512 with block_h=256 exercises the hidden-chunk reduction axis, and
    # block_b=128 gives grid_b=2 (even -> shards across v7x's 2 TensorCores).
    B, D_in, H, D_out = 256, 100, 512, 10
    x = jax.random.normal(kx, (B, D_in), jnp.float32)
    w1, b1, w2, b2 = init_params(kp, D_in, H, D_out)

    # Reference in plain JAX (dropout is identity in eval mode).
    ref = jnp.maximum(x @ w1 + b1, 0.0) @ w2 + b2

    # Exact-semantics path (f32 operands, f32 accumulation). Weights are
    # padded/cast once, outside the per-call path.
    params_f32 = prepare_params(w1, b1, w2, b2, compute_dtype=jnp.float32)
    out_f32 = mlp_forward(x, *params_f32, d_out=D_out, block_b=128, block_h=256)
    jax.block_until_ready(out_f32)
    assert out_f32.shape == (B, D_out)
    assert jnp.allclose(out_f32, ref, atol=1e-4, rtol=1e-4)

    # Fast path (bf16 operands + bf16 output, f32 MXU accumulation).
    params_bf16 = prepare_params(w1, b1, w2, b2, compute_dtype=jnp.bfloat16)
    out_bf16 = mlp_forward(x, *params_bf16, d_out=D_out, block_b=128, block_h=256,
                           out_dtype=jnp.bfloat16)
    jax.block_until_ready(out_bf16)
    assert out_bf16.shape == (B, D_out)
    assert out_bf16.dtype == jnp.bfloat16
    assert jnp.allclose(out_bf16.astype(jnp.float32), ref, atol=1e-1, rtol=1e-1)

    print("KERNEL_OK")
</pallas_src>

<mosaic_0001>
module attributes {stable_mosaic.version = 11 : i64} {
  func.func @_mlp_kernel(%arg0: i32, %arg1: i32, %arg2: memref<128x128xf32, #tpu.memory_space<vmem>>, %arg3: memref<128x256xf32, #tpu.memory_space<vmem>>, %arg4: memref<1x256xf32, #tpu.memory_space<vmem>>, %arg5: memref<256x128xf32, #tpu.memory_space<vmem>>, %arg6: memref<1x128xf32, #tpu.memory_space<vmem>>, %arg7: memref<128x128xf32, #tpu.memory_space<vmem>>, %arg8: memref<128x128xf32, #tpu.memory_space<vmem>>) attributes {dimension_semantics = [#tpu.dimension_semantics<parallel>, #tpu.dimension_semantics<arbitrary>], iteration_bounds = array<i64: 2, 2>, scalar_prefetch = 0 : i64, scratch_operands = 1 : i64, tpu.core_type = #tpu.core_type<tc>, window_params = [{transform_indices = @transform_0, window_bounds = array<i64: 128, 128>}, {transform_indices = @transform_1, window_bounds = array<i64: 128, 256>}, {transform_indices = @transform_2, window_bounds = array<i64: 1, 256>}, {transform_indices = @transform_3, window_bounds = array<i64: 256, 128>}, {pipeline_mode = #tpu.pipeline_mode<synchronous>, transform_indices = @transform_4, window_bounds = array<i64: 1, 128>}, {transform_indices = @transform_5, window_bounds = array<i64: 128, 128>}]} {
    %c0_i32 = arith.constant 0 : i32
    %0 = arith.cmpi eq, %arg1, %c0_i32 : i32
    %1 = arith.extui %0 : i1 to i32
    %c0_i32_0 = arith.constant 0 : i32
    %2 = arith.cmpi ne, %1, %c0_i32_0 : i32
    scf.if %2 {
      %cst_15 = arith.constant 0.000000e+00 : f32
      %19 = vector.broadcast %cst_15 : f32 to vector<128x128xf32>
      %c0_16 = arith.constant 0 : index
      %c0_17 = arith.constant 0 : index
      %20 = vector.load %arg8[%c0_16, %c0_17] : memref<128x128xf32, #tpu.memory_space<vmem>>, vector<128x128xf32>
      tpu.vector_store %arg8[%c0_16, %c0_17], %19 {strides = array<i32>} : memref<128x128xf32, #tpu.memory_space<vmem>>, vector<128x128xf32>,
    } else {
    }
    %c0 = arith.constant 0 : index
    %c0_1 = arith.constant 0 : index
    %3 = vector.load %arg2[%c0, %c0_1] : memref<128x128xf32, #tpu.memory_space<vmem>>, vector<128x128xf32>
    %c0_2 = arith.constant 0 : index
    %c0_3 = arith.constant 0 : index
    %4 = vector.load %arg3[%c0_2, %c0_3] : memref<128x256xf32, #tpu.memory_space<vmem>>, vector<128x256xf32>
    %cst = arith.constant dense<0.000000e+00> : vector<128x256xf32>
    %5 = tpu.matmul %3, %4, %cst {dimension_numbers = #tpu.dot_dimension_numbers<[1], [0], [0], [1], [0, 0, 1, 1], [], []>} : vector<128x128xf32>, vector<128x256xf32>, vector<128x256xf32> -> vector<128x256xf32>
    %c0_4 = arith.constant 0 : index
    %c0_5 = arith.constant 0 : index
    %6 = vector.load %arg4[%c0_4, %c0_5] : memref<1x256xf32, #tpu.memory_space<vmem>>, vector<1x256xf32>
    %7 = vector.broadcast %6 : vector<1x256xf32> to vector<128x256xf32>
    %8 = arith.addf %5, %7 : vector<128x256xf32>
    %cst_6 = arith.constant 0.000000e+00 : f32
    %9 = vector.broadcast %cst_6 : f32 to vector<128x256xf32>
    %10 = arith.maximumf %8, %9 : vector<128x256xf32>
    %c0_7 = arith.constant 0 : index
    %c0_8 = arith.constant 0 : index
    %11 = vector.load %arg8[%c0_7, %c0_8] : memref<128x128xf32, #tpu.memory_space<vmem>>, vector<128x128xf32>
    %c0_9 = arith.constant 0 : index
    %c0_10 = arith.constant 0 : index
    %12 = vector.load %arg5[%c0_9, %c0_10] : memref<256x128xf32, #tpu.memory_space<vmem>>, vector<256x128xf32>
    %cst_11 = arith.constant dense<0.000000e+00> : vector<128x128xf32>
    %13 = tpu.matmul %10, %12, %cst_11 {dimension_numbers = #tpu.dot_dimension_numbers<[1], [0], [0], [1], [0, 0, 1, 1], [], []>} : vector<128x256xf32>, vector<256x128xf32>, vector<128x128xf32> -> vector<128x128xf32>
    %14 = arith.addf %11, %13 : vector<128x128xf32>
    %c0_12 = arith.constant 0 : index
    %c0_13 = arith.constant 0 : index
    %15 = vector.load %arg8[%c0_12, %c0_13] : memref<128x128xf32, #tpu.memory_space<vmem>>, vector<128x128xf32>
    tpu.vector_store %arg8[%c0_12, %c0_13], %14 {strides = array<i32>} : memref<128x128xf32, #tpu.memory_space<vmem>>, vector<128x128xf32>,
    %c1_i32 = arith.constant 1 : i32
    %16 = arith.cmpi eq, %arg1, %c1_i32 : i32
    %17 = arith.extui %16 : i1 to i32
    %c0_i32_14 = arith.constant 0 : i32
    %18 = arith.cmpi ne, %17, %c0_i32_14 : i32
    scf.if %18 {
      %c0_15 = arith.constant 0 : index
      %c0_16 = arith.constant 0 : index
      %19 = vector.load %arg8[%c0_15, %c0_16] : memref<128x128xf32, #tpu.memory_space<vmem>>, vector<128x128xf32>
      %c0_17 = arith.constant 0 : index
      %c0_18 = arith.constant 0 : index
      %20 = vector.load %arg6[%c0_17, %c0_18] : memref<1x128xf32, #tpu.memory_space<vmem>>, vector<1x128xf32>
      %21 = vector.broadcast %20 : vector<1x128xf32> to vector<128x128xf32>
      %22 = arith.addf %19, %21 : vector<128x128xf32>
      %c0_19 = arith.constant 0 : index
      %c0_20 = arith.constant 0 : index
      %23 = vector.load %arg7[%c0_19, %c0_20] : memref<128x128xf32, #tpu.memory_space<vmem>>, vector<128x128xf32>
      tpu.vector_store %arg7[%c0_19, %c0_20], %22 {strides = array<i32>} : memref<128x128xf32, #tpu.memory_space<vmem>>, vector<128x128xf32>,
    } else {
    }
    return
  }
  func.func @transform_0(%arg0: i32, %arg1: i32) -> (i32, i32) {
    %c0_i32 = arith.constant 0 : i32
    %c0_i32_0 = arith.constant 0 : i32
    return %arg0, %c0_i32 : i32, i32
  }
  func.func @transform_1(%arg0: i32, %arg1: i32) -> (i32, i32) {
    %c0_i32 = arith.constant 0 : i32
    %c0_i32_0 = arith.constant 0 : i32
    return %c0_i32, %arg1 : i32, i32
  }
  func.func @transform_2(%arg0: i32, %arg1: i32) -> (i32, i32) {
    %c0_i32 = arith.constant 0 : i32
    %c0_i32_0 = arith.constant 0 : i32
    return %c0_i32, %arg1 : i32, i32
  }
  func.func @transform_3(%arg0: i32, %arg1: i32) -> (i32, i32) {
    %c0_i32 = arith.constant 0 : i32
    %c0_i32_0 = arith.constant 0 : i32
    return %arg1, %c0_i32 : i32, i32
  }
  func.func @transform_4(%arg0: i32, %arg1: i32) -> (i32, i32) {
    %c0_i32 = arith.constant 0 : i32
    %c0_i32_0 = arith.constant 0 : i32
    %c0_i32_1 = arith.constant 0 : i32
    return %c0_i32, %c0_i32_0 : i32, i32
  }
  func.func @transform_5(%arg0: i32, %arg1: i32) -> (i32, i32) {
    %c0_i32 = arith.constant 0 : i32
    %c0_i32_0 = arith.constant 0 : i32
    return %arg0, %c0_i32 : i32, i32
  }
}

</mosaic_0001>

<llo_original>
// kernel: mlp_forward.1
$region0: #{mlp_forward.1}
  #allocation0 [shape = 'u32[]', space=smem, size = 0x4, offset = 0x4, fixed_abs, tag = 'smem constant byte address 0x4 - core index']
  #allocation1 [shape = 'u32[144,128]{1,0:T(1,128)}', space=vmem, size = 0x12000, scoped, tag = 'internal scratch']
  #allocation2 [shape = 'f32[128,128]{1,0:T(8,128)}', space=vmem, size = 0x10000, scoped, tag = 'scratch operand']
  %s0 = inlined_call_operand.vmem [shape: f32[256,128], index: 0, kind: input, shape index: {}]
  %s1 = inlined_call_operand.vmem [shape: f32[128,512], index: 1, kind: input, shape index: {}]
  %s2 = inlined_call_operand.vmem [shape: f32[1,512], index: 2, kind: input, shape index: {}]
  %s3 = inlined_call_operand.hbm [shape: f32[512,128], index: 3, kind: input, shape index: {}]
  %s4 = inlined_call_operand.vmem [shape: f32[1,128], index: 4, kind: input, shape index: {}]
  %s5 = inlined_call_operand.vmem [shape: f32[256,128], index: 5, kind: output, shape index: {}]
  %s6 = sld [smem:[#allocation0]]
  $region88: #{mlp_forward.1} parent=0
    _
  %s8 = ssub.s32 1, %s6
  %s9 = scalar_select 0, %s8, %s6
  $region1: #{mlp_forward.1} parent=0
    #allocation3 [shape = 'u8[262144]{0}', space=vmem, size = 0x40000, scoped, tag = 'input window, operand 1']
    #allocation4 [shape = 'u8[262144]{0}', space=vmem, size = 0x40000, scoped, tag = 'input window, operand 3']
    #allocation5 [shape = 's32[2]{0}', space=sflag, size = 0x8, scoped, tag = 'scoped memory for mlp_forward.1']
    %10 = vsyncpa [#allocation5], 0
    %s11 = scalar_lea.sflag [#allocation5], 1
    %12 = vsyncpa %s11, 0
    loop: start=0, step=1, limit=6
    $region2: #{mlp_forward.1} parent=1 // loop_pre_header
      _
    $region3: #{mlp_forward.1} parent=1 // loop_header
      %s14 = sphi 0, %s18
      %p15 = scmp.ge.s32.totalorder %s14, 6
      %s21 = sphi 0, %s33
      %s22 = sphi 0, %s29
      %s23 = sphi 0, %s21
      %s24 = sphi 0, %s22
      %s25 = sphi 0, %s23
      %s26 = sphi 0, %s24
      %s36 = sphi 0, %s38
      %s39 = sphi 0, %s36
      %s40 = sphi 0, %s39
      %s56 = sphi 0, %s40
      %s62 = sphi 0, %s64
      %s65 = sphi 0, %s62
      %s66 = sphi 0, %s65
      %s82 = sphi 0, %s66
      %s88 = sphi 0, %s90
      %s91 = sphi 0, %s88
      %s92 = sphi 0, %s91
      %s108 = sphi 0, %s92
      %s114 = sphi 0, %s116
      %s117 = sphi 0, %s114
      %s118 = sphi 0, %s117
      %s134 = sphi 0, %s118
      %s138 = sphi 0, %s138
      %s140 = sphi 0, %s138
      %s141 = sphi 0, %s140
      %s155 = sphi 0, %s141
      %s161 = sphi 0, %s163
      %s164 = sphi 0, %s161
      %s165 = sphi 0, %s164
      %s181 = sphi 0, %s165
    $region4: #{mlp_forward.1} parent=1 // loop_header_branch
      %17 = sbr.rel (%p15) target = $region8
    $region5: #{mlp_forward.1} parent=1 // loop_body
      %s19 = ssub.s32 %s14, 1
      %s20 = ssub.s32 %s14, 2
      %s27 = sadd.s32 1, %s22
      %p28 = scmp.ge.s32.totalorder %s27, 2
      %s29 = scalar_select %p28, 0, %s27
      %s30 = sadd.s32 1, %s21
      %s31 = scalar_select %p28, %s30, %s21
      %p32 = scmp.ge.s32.totalorder %s31, 2
      %s33 = scalar_select %p32, 0, %s31
      %s34 = ssub.s32 %s21, %s33
      %p35 = scmp.eq.s32.totalorder %s34, 0
      %s37 = sadd.s32 %s36, 1
      %s38 = scalar_select %p35, %s36, %s37
      %p41 = pneg %p35
      %p42 = scmp.eq.s32.totalorder %s14, 3
      %p43 = por %p41, %p42
      %p44 = scmp.ne.s32.totalorder %s36, %s39
      %p45 = scmp.eq.s32.totalorder %s14, 0
      %p46 = por %p44, %p45
      %p47 = scmp.ne.s32.totalorder %s36, %s39
      %p48 = scmp.eq.s32.totalorder %s19, 3
      %p49 = por %p47, %p48
      %p50 = scmp.ne.s32.totalorder %s39, %s40
      %p51 = scmp.eq.s32.totalorder %s19, 0
      %p52 = por %p50, %p51
      %p53 = scmp.ne.s32.totalorder %s39, %s40
      %p54 = scmp.eq.s32.totalorder %s20, 3
      %p55 = por %p53, %p54
      %p57 = scmp.ne.s32.totalorder %s40, %s56
      %p58 = scmp.eq.s32.totalorder %s20, 0
      %p59 = por %p57, %p58
      %s60 = ssub.s32 %s22, %s29
      %p61 = scmp.eq.s32.totalorder %s60, 0
      %s63 = sadd.s32 %s62, 1
      %s64 = scalar_select %p61, %s62, %s63
      %p67 = pneg %p61
      %p68 = scmp.eq.s32.totalorder %s14, 3
      %p69 = por %p67, %p68
      %p70 = scmp.ne.s32.totalorder %s62, %s65
      %p71 = scmp.eq.s32.totalorder %s14, 0
      %p72 = por %p70, %p71
      %p73 = scmp.ne.s32.totalorder %s62, %s65
      %p74 = scmp.eq.s32.totalorder %s19, 3
      %p75 = por %p73, %p74
      %p76 = scmp.ne.s32.totalorder %s65, %s66
      %p77 = scmp.eq.s32.totalorder %s19, 0
      %p78 = por %p76, %p77
      %p79 = scmp.ne.s32.totalorder %s65, %s66
      %p80 = scmp.eq.s32.totalorder %s20, 3
      %p81 = por %p79, %p80
      %p83 = scmp.ne.s32.totalorder %s66, %s82
      %p84 = scmp.eq.s32.totalorder %s20, 0
      %p85 = por %p83, %p84
      %s86 = ssub.s32 %s22, %s29
      %p87 = scmp.eq.s32.totalorder %s86, 0
      %s89 = sadd.s32 %s88, 1
      %s90 = scalar_select %p87, %s88, %s89
      %p93 = pneg %p87
      %p94 = scmp.eq.s32.totalorder %s14, 3
      %p95 = por %p93, %p94
      %p96 = scmp.ne.s32.totalorder %s88, %s91
      %p97 = scmp.eq.s32.totalorder %s14, 0
      %p98 = por %p96, %p97
      %p99 = scmp.ne.s32.totalorder %s88, %s91
      %p100 = scmp.eq.s32.totalorder %s19, 3
      %p101 = por %p99, %p100
      %p102 = scmp.ne.s32.totalorder %s91, %s92
      %p103 = scmp.eq.s32.totalorder %s19, 0
      %p104 = por %p102, %p103
      %p105 = scmp.ne.s32.totalorder %s91, %s92
      %p106 = scmp.eq.s32.totalorder %s20, 3
      %p107 = por %p105, %p106
      %p109 = scmp.ne.s32.totalorder %s92, %s108
      %p110 = scmp.eq.s32.totalorder %s20, 0
      %p111 = por %p109, %p110
      %s112 = ssub.s32 %s22, %s29
      %p113 = scmp.eq.s32.totalorder %s112, 0
      %s115 = sadd.s32 %s114, 1
      %s116 = scalar_select %p113, %s114, %s115
      %p119 = pneg %p113
      %p120 = scmp.eq.s32.totalorder %s14, 3
      %p121 = por %p119, %p120
      %p122 = scmp.ne.s32.totalorder %s114, %s117
      %p123 = scmp.eq.s32.totalorder %s14, 0
      %p124 = por %p122, %p123
      %p125 = scmp.ne.s32.totalorder %s114, %s117
      %p126 = scmp.eq.s32.totalorder %s19, 3
      %p127 = por %p125, %p126
      %p128 = scmp.ne.s32.totalorder %s117, %s118
      %p129 = scmp.eq.s32.totalorder %s19, 0
      %p130 = por %p128, %p129
      %p131 = scmp.ne.s32.totalorder %s117, %s118
      %p132 = scmp.eq.s32.totalorder %s20, 3
      %p133 = por %p131, %p132
      %p135 = scmp.ne.s32.totalorder %s118, %s134
      %p136 = scmp.eq.s32.totalorder %s20, 0
      %p137 = por %p135, %p136
      %s139 = sadd.s32 %s138, 1
      %p142 = scmp.eq.s32.totalorder %s14, 3
      %p143 = scmp.ne.s32.totalorder %s138, %s140
      %p144 = scmp.eq.s32.totalorder %s14, 0
      %p145 = por %p143, %p144
      %p146 = scmp.ne.s32.totalorder %s138, %s140
      %p147 = scmp.eq.s32.totalorder %s19, 3
      %p148 = por %p146, %p147
      %p149 = scmp.ne.s32.totalorder %s140, %s141
      %p150 = scmp.eq.s32.totalorder %s19, 0
      %p151 = por %p149, %p150
      %p152 = scmp.ne.s32.totalorder %s140, %s141
      %p153 = scmp.eq.s32.totalorder %s20, 3
      %p154 = por %p152, %p153
      %p156 = scmp.ne.s32.totalorder %s141, %s155
      %p157 = scmp.eq.s32.totalorder %s20, 0
      %p158 = por %p156, %p157
      %s159 = ssub.s32 %s21, %s33
      %p160 = scmp.eq.s32.totalorder %s159, 0
      %s162 = sadd.s32 %s161, 1
      %s163 = scalar_select %p160, %s161, %s162
      %p166 = pneg %p160
      %p167 = scmp.eq.s32.totalorder %s14, 3
      %p168 = por %p166, %p167
      %p169 = scmp.ne.s32.totalorder %s161, %s164
      %p170 = scmp.eq.s32.totalorder %s14, 0
      %p171 = por %p169, %p170
      %p172 = scmp.ne.s32.totalorder %s161, %s164
      %p173 = scmp.eq.s32.totalorder %s19, 3
      %p174 = por %p172, %p173
      %p175 = scmp.ne.s32.totalorder %s164, %s165
      %p176 = scmp.eq.s32.totalorder %s19, 0
      %p177 = por %p175, %p176
      %p178 = scmp.ne.s32.totalorder %s164, %s165
      %p179 = scmp.eq.s32.totalorder %s20, 3
      %p180 = por %p178, %p179
      %p182 = scmp.ne.s32.totalorder %s165, %s181
      %p183 = scmp.eq.s32.totalorder %s20, 0
      %p184 = por %p182, %p183
      %p185 = scmp.le.s32.totalorder 1, %s14
      %p186 = scmp.lt.s32.totalorder %s14, 5
      %p187 = pnand %p185, %p186
      %p188 = pneg %p187
      // Predicated region
      $region9: #{mlp_forward.1} parent=5 // pred_check
        _
      $region10: #{mlp_forward.1} parent=5 // pred_check_branch
        %190 = sbr.rel (%p187) target = $region12
      $region11: #{mlp_forward.1} parent=5 // pred_region
        %s191 = ssub.s32 %s14, 1
        // Predicated region
        $region13: #{mlp_forward.1} parent=11 // pred_check
          %p192 = pneg %p151
        $region14: #{mlp_forward.1} parent=11 // pred_check_branch
          %194 = sbr.rel (%p192) target = $region16
        $region15: #{mlp_forward.1} parent=11 // pred_region
          _
        $region16: #{mlp_forward.1} parent=11 // pred_fallthru
          _
      $region12: #{mlp_forward.1} parent=5 // pred_fallthru
        _
      %p195 = scmp.lt.s32.totalorder %s14, 4
      // Predicated region
      $region17: #{mlp_forward.1} parent=5 // pred_check
        %p196 = pneg %p195
      $region18: #{mlp_forward.1} parent=5 // pred_check_branch
        %198 = sbr.rel (%p196) target = $region20
      $region19: #{mlp_forward.1} parent=5 // pred_region
        // Predicated region
        $region21: #{mlp_forward.1} parent=19 // pred_check
          %p199 = pneg %p46
        $region22: #{mlp_forward.1} parent=19 // pred_check_branch
          %201 = sbr.rel (%p199) target = $region24
        $region23: #{mlp_forward.1} parent=19 // pred_region
          %s202 = smul.u32 16, %s21
          %p203 = scmp.lt.s32.totalorder %s202, 31
          %s204 = scalar_select %p203, %s202, 31
          %s205 = smul.addr %s204, 8
          %s206 = scalar_lea.vmem %s0, %s205
          %s207 = smul.u32 16, %s21
        $region24: #{mlp_forward.1} parent=19 // pred_fallthru
          _
        // Predicated region
        $region25: #{mlp_forward.1} parent=19 // pred_check
          %p208 = pneg %p72
        $region26: #{mlp_forward.1} parent=19 // pred_check_branch
          %210 = sbr.rel (%p208) target = $region28
        $region27: #{mlp_forward.1} parent=19 // pred_region
          %s211 = sand.u32 %s62, 1
          %s212 = sand.u32 %s62, 1
          %s213 = smul.addr %s212, 256
          %s214 = scalar_lea.vmem [#allocation3], %s213
          %s215 = smul.u32 2, %s22
          %s216 = smul.addr %s215, 8
          %s217 = scalar_lea.vmem %s1, %s216
          // Predicated region
          $region29: #{mlp_forward.1} parent=27 // pred_check
            _
          $region30: #{mlp_forward.1} parent=27 // pred_check_branch
            %219 = sbr.rel (0) target = $region32
          $region31: #{mlp_forward.1} parent=27 // pred_region
            // Predicated region
            $region33: #{mlp_forward.1} parent=31 // pred_check
              _
            $region34: #{mlp_forward.1} parent=31 // pred_check_branch
              %221 = sbr.rel (0) target = $region36
            $region35: #{mlp_forward.1} parent=31 // pred_region
              loop: start=0, step=1, limit=1
              $region37: #{mlp_forward.1} parent=35 // loop_pre_header
                _
              $region38: #{mlp_forward.1} parent=35 // loop_header
                %s223 = sphi 0, %s227
                %p224 = scmp.ge.s32.totalorder %s223, 1
                %s228 = sphi %s217, %s217
                %s229 = sphi %s214, %s214
              $region39: #{mlp_forward.1} parent=35 // loop_header_branch
                %226 = sbr.rel (%p224) target = $region43
              $region40: #{mlp_forward.1} parent=35 // loop_body
                %v230 = vld [vmem:[%s228] sm:$0xff]
                %231 = vst [vmem:[%s229] sm:$0xff] %v230
                %v232 = vld [vmem:[%s228 + $0x8] sm:$0xff]
                %233 = vst [vmem:[%s229 + $0x8] sm:$0xff] %v232
                %v234 = vld [vmem:[%s228 + $0x20] sm:$0xff]
                %235 = vst [vmem:[%s229 + $0x10] sm:$0xff] %v234
                %v236 = vld [vmem:[%s228 + $0x28] sm:$0xff]
                %237 = vst [vmem:[%s229 + $0x18] sm:$0xff] %v236
                %v238 = vld [vmem:[%s228 + $0x40] sm:$0xff]
                %239 = vst [vmem:[%s229 + $0x20] sm:$0xff] %v238
                %v240 = vld [vmem:[%s228 + $0x48] sm:$0xff]
                %241 = vst [vmem:[%s229 + $0x28] sm:$0xff] %v240
                %v242 = vld [vmem:[%s228 + $0x60] sm:$0xff]
                %243 = vst [vmem:[%s229 + $0x30] sm:$0xff] %v242
                %v244 = vld [vmem:[%s228 + $0x68] sm:$0xff]
                %245 = vst [vmem:[%s229 + $0x38] sm:$0xff] %v244
                %v246 = vld [vmem:[%s228 + $0x80] sm:$0xff]
                %247 = vst [vmem:[%s229 + $0x40] sm:$0xff] %v246
                %v248 = vld [vmem:[%s228 + $0x88] sm:$0xff]
                %249 = vst [vmem:[%s229 + $0x48] sm:$0xff] %v248
                %v250 = vld [vmem:[%s228 + $0xa0] sm:$0xff]
                %251 = vst [vmem:[%s229 + $0x50] sm:$0xff] %v250
                %v252 = vld [vmem:[%s228 + $0xa8] sm:$0xff]
                %253 = vst [vmem:[%s229 + $0x58] sm:$0xff] %v252
                %v254 = vld [vmem:[%s228 + $0xc0] sm:$0xff]
                %255 = vst [vmem:[%s229 + $0x60] sm:$0xff] %v254
                %v256 = vld [vmem:[%s228 + $0xc8] sm:$0xff]
                %257 = vst [vmem:[%s229 + $0x68] sm:$0xff] %v256
                %v258 = vld [vmem:[%s228 + $0xe0] sm:$0xff]
                %259 = vst [vmem:[%s229 + $0x70] sm:$0xff] %v258
                %v260 = vld [vmem:[%s228 + $0xe8] sm:$0xff]
                %261 = vst [vmem:[%s229 + $0x78] sm:$0xff] %v260
                %v262 = vld [vmem:[%s228 + $0x100] sm:$0xff]
                %263 = vst [vmem:[%s229 + $0x80] sm:$0xff] %v262
                %v264 = vld [vmem:[%s228 + $0x108] sm:$0xff]
                %265 = vst [vmem:[%s229 + $0x88] sm:$0xff] %v264
                %v266 = vld [vmem:[%s228 + $0x120] sm:$0xff]
                %267 = vst [vmem:[%s229 + $0x90] sm:$0xff] %v266
                %v268 = vld [vmem:[%s228 + $0x128] sm:$0xff]
                %269 = vst [vmem:[%s229 + $0x98] sm:$0xff] %v268
                %v270 = vld [vmem:[%s228 + $0x140] sm:$0xff]
                %271 = vst [vmem:[%s229 + $0xa0] sm:$0xff] %v270
                %v272 = vld [vmem:[%s228 + $0x148] sm:$0xff]
                %273 = vst [vmem:[%s229 + $0xa8] sm:$0xff] %v272
                %v274 = vld [vmem:[%s228 + $0x160] sm:$0xff]
                %275 = vst [vmem:[%s229 + $0xb0] sm:$0xff] %v274
                %v276 = vld [vmem:[%s228 + $0x168] sm:$0xff]
                %277 = vst [vmem:[%s229 + $0xb8] sm:$0xff] %v276
                %v278 = vld [vmem:[%s228 + $0x180] sm:$0xff]
                %279 = vst [vmem:[%s229 + $0xc0] sm:$0xff] %v278
                %v280 = vld [vmem:[%s228 + $0x188] sm:$0xff]
                %281 = vst [vmem:[%s229 + $0xc8] sm:$0xff] %v280
                %v282 = vld [vmem:[%s228 + $0x1a0] sm:$0xff]
                %283 = vst [vmem:[%s229 + $0xd0] sm:$0xff] %v282
                %v284 = vld [vmem:[%s228 + $0x1a8] sm:$0xff]
                %285 = vst [vmem:[%s229 + $0xd8] sm:$0xff] %v284
                %v286 = vld [vmem:[%s228 + $0x1c0] sm:$0xff]
                %287 = vst [vmem:[%s229 + $0xe0] sm:$0xff] %v286
                %v288 = vld [vmem:[%s228 + $0x1c8] sm:$0xff]
                %289 = vst [vmem:[%s229 + $0xe8] sm:$0xff] %v288
                %v290 = vld [vmem:[%s228 + $0x1e0] sm:$0xff]
                %291 = vst [vmem:[%s229 + $0xf0] sm:$0xff] %v290
                %v292 = vld [vmem:[%s228 + $0x1e8] sm:$0xff]
                %293 = vst [vmem:[%s229 + $0xf8] sm:$0xff] %v292
              $region41: #{mlp_forward.1} parent=35 // loop_footer
                %s227 = sadd.s32 1, %s223
              $region42: #{mlp_forward.1} parent=35 // loop_footer_branch
                %222 = sbr.rel target = $region38
              $region43: #{mlp_forward.1} parent=35 // loop_exit
                _
            $region36: #{mlp_forward.1} parent=31 // pred_fallthru
              _
            // Predicated region
            $region44: #{mlp_forward.1} parent=31 // pred_check
              _
            $region45: #{mlp_forward.1} parent=31 // pred_check_branch
              %295 = sbr.rel target = $region47
            $region46: #{mlp_forward.1} parent=31 // pred_region
              _
            $region47: #{mlp_forward.1} parent=31 // pred_fallthru
              _
          $region32: #{mlp_forward.1} parent=27 // pred_fallthru
            _
          %296 = vnop
        $region28: #{mlp_forward.1} parent=19 // pred_fallthru
          _
        // Predicated region
        $region48: #{mlp_forward.1} parent=19 // pred_check
          %p297 = pneg %p98
        $region49: #{mlp_forward.1} parent=19 // pred_check_branch
          %299 = sbr.rel (%p297) target = $region51
        $region50: #{mlp_forward.1} parent=19 // pred_region
          %s300 = smul.u32 2, %s22
          %p301 = scmp.lt.s32.totalorder %s300, 3
          %s302 = scalar_select %p301, %s300, 3
          %s303 = scalar_lea.vmem %s2, %s302
          %s304 = smul.u32 2, %s22
        $region51: #{mlp_forward.1} parent=19 // pred_fallthru
          _
        // Predicated region
        $region52: #{mlp_forward.1} parent=19 // pred_check
          %p305 = pneg %p124
        $region53: #{mlp_forward.1} parent=19 // pred_check_branch
          %307 = sbr.rel (%p305) target = $region55
        $region54: #{mlp_forward.1} parent=19 // pred_region
          %s308 = sand.u32 %s114, 1
          %s309 = scalar_lea.sflag [#allocation5], %s308
          %s310 = sand.u32 %s114, 1
          %s311 = smul.addr %s310, 256
          %s312 = scalar_lea.vmem [#allocation4], %s311
          %s313 = smul.u32 32, %s22
          %s315 = ssub.s32 4096, 4096
          %316 = vsyncadd %s309, %s315
          %s317 = smul.addr %s313, 128
          %s318 = scalar_lea.hbm %s3, %s317
          %s319 = sshll.u32 %s312, 4
          %s320 = int_to_ptr.vmem [resolvable:$true] %s319
          %325 = dma.hbm_to_vmem [thread:$0]  %s318, 4096, %s320, %s309, 128, 128, 8
        $region55: #{mlp_forward.1} parent=19 // pred_fallthru
          _
      $region20: #{mlp_forward.1} parent=5 // pred_fallthru
        _
      %p326 = scmp.le.s32.totalorder 1, %s14
      %p327 = scmp.lt.s32.totalorder %s14, 5
      %p328 = pnand %p326, %p327
      %p329 = pneg %p328
      // Predicated region
      $region56: #{mlp_forward.1} parent=5 // pred_check
        _
      $region57: #{mlp_forward.1} parent=5 // pred_check_branch
        %331 = sbr.rel (%p328) target = $region59
      $region58: #{mlp_forward.1} parent=5 // pred_region
        %s332 = ssub.s32 %s14, 1
        %s333 = sand.u32 %s65, 1
        %s334 = sand.u32 %s65, 1
        %s335 = smul.addr %s334, 256
        %s336 = scalar_lea.vmem [#allocation3], %s335
        // Predicated region
        $region60: #{mlp_forward.1} parent=58 // pred_check
          %p337 = pneg %p78
        $region61: #{mlp_forward.1} parent=58 // pred_check_branch
          %339 = sbr.rel (%p337) target = $region63
        $region62: #{mlp_forward.1} parent=58 // pred_region
          _
        $region63: #{mlp_forward.1} parent=58 // pred_fallthru
          _
        %s340 = sand.u32 %s117, 1
        %s341 = scalar_lea.sflag [#allocation5], %s340
        %s342 = sand.u32 %s117, 1
        %s343 = smul.addr %s342, 256
        %s344 = scalar_lea.vmem [#allocation4], %s343
        // Predicated region
        $region64: #{mlp_forward.1} parent=58 // pred_check
          %p345 = pneg %p130
        $region65: #{mlp_forward.1} parent=58 // pred_check_branch
          %347 = sbr.rel (%p345) target = $region67
        $region66: #{mlp_forward.1} parent=58 // pred_region
          %348 = dma.done %s341, 4096
        $region67: #{mlp_forward.1} parent=58 // pred_fallthru
          _
        %s349 = smul.u32 16, %s23
        %p350 = scmp.lt.s32.totalorder %s349, 31
        %s351 = scalar_select %p350, %s349, 31
        %s352 = smul.addr %s351, 8
        %s353 = scalar_lea.vmem %s0, %s352
        %p354 = pneg %p52
        %p355 = pneg %p49
        %s356 = sand.u32 %s65, 1
        %s357 = sand.u32 %s65, 1
        %s358 = smul.addr %s357, 256
        %s359 = scalar_lea.vmem [#allocation3], %s358
        %p360 = pneg %p78
        %p361 = pneg %p75
        %s362 = smul.u32 2, %s24
        %p363 = scmp.lt.s32.totalorder %s362, 3
        %s364 = scalar_select %p363, %s362, 3
        %s365 = scalar_lea.vmem %s2, %s364
        %p366 = pneg %p104
        %p367 = pneg %p101
        %s368 = sand.u32 %s117, 1
        %s369 = scalar_lea.sflag [#allocation5], %s368
        %s370 = sand.u32 %s117, 1
        %s371 = smul.addr %s370, 256
        %s372 = scalar_lea.vmem [#allocation4], %s371
        %p373 = pneg %p130
        %p374 = pneg %p127
        %p375 = pneg %p151
        %p376 = pneg %p148
        %p377 = pneg %p177
        %p378 = pneg %p174
        %s379 = smul.u32 16, %s23
        %p380 = scmp.lt.s32.totalorder %s379, 31
        %s381 = scalar_select %p380, %s379, 31
        %s382 = smul.addr %s381, 8
        %s383 = scalar_lea.vmem %s5, %s382
        %s384 = smul.u32 16, %s23
        %p385 = scmp.lt.s32.totalorder %s384, 31
        %s386 = scalar_select %p385, %s384, 31
        %s387 = smul.addr %s386, 8
        %s388 = scalar_lea.vmem %s0, %s387
        %s389 = smul.u32 16, %s23
        %s390 = smul.u32 2, %s24
        %s391 = smul.u32 2, %s24
        %p392 = scmp.lt.s32.totalorder %s391, 3
        %s393 = scalar_select %p392, %s391, 3
        %s394 = scalar_lea.vmem %s2, %s393
        %s395 = smul.u32 2, %s24
        %s396 = smul.u32 32, %s24
        %s397 = smul.u32 16, %s23
        %p398 = scmp.lt.s32.totalorder %s397, 31
        %s399 = scalar_select %p398, %s397, 31
        %s400 = smul.addr %s399, 8
        %s401 = scalar_lea.vmem %s5, %s400
        %s402 = smul.u32 16, %s23
        %p403 = scmp.eq.s32.totalorder %s24, 0
        // Predicated region
        $region68: #{mlp_forward.1} parent=58 // pred_check
          %p404 = pneg %p403
        $region69: #{mlp_forward.1} parent=58 // pred_check_branch
          %406 = sbr.rel (%p404) target = $region71
        $region70: #{mlp_forward.1} parent=58 // pred_region
          %407 = vst [vmem:[#allocation2] sm:$0xff] 0.0
          %408 = vst [vmem:[#allocation2 + $0x8] sm:$0xff] 0.0
          %409 = vst [vmem:[#allocation2 + $0x10] sm:$0xff] 0.0
          %410 = vst [vmem:[#allocation2 + $0x18] sm:$0xff] 0.0
          %411 = vst [vmem:[#allocation2 + $0x20] sm:$0xff] 0.0
          %412 = vst [vmem:[#allocation2 + $0x28] sm:$0xff] 0.0
          %413 = vst [vmem:[#allocation2 + $0x30] sm:$0xff] 0.0
          %414 = vst [vmem:[#allocation2 + $0x38] sm:$0xff] 0.0
          %415 = vst [vmem:[#allocation2 + $0x40] sm:$0xff] 0.0
          %416 = vst [vmem:[#allocation2 + $0x48] sm:$0xff] 0.0
          %417 = vst [vmem:[#allocation2 + $0x50] sm:$0xff] 0.0
          %418 = vst [vmem:[#allocation2 + $0x58] sm:$0xff] 0.0
          %419 = vst [vmem:[#allocation2 + $0x60] sm:$0xff] 0.0
          %420 = vst [vmem:[#allocation2 + $0x68] sm:$0xff] 0.0
          %421 = vst [vmem:[#allocation2 + $0x70] sm:$0xff] 0.0
          %422 = vst [vmem:[#allocation2 + $0x78] sm:$0xff] 0.0
        $region71: #{mlp_forward.1} parent=58 // pred_fallthru
          _
        %v423 = vld [vmem:[%s388] sm:$0xff]
        %v424 = vld [vmem:[%s388 + $0x8] sm:$0xff]
        %v425 = vld [vmem:[%s388 + $0x10] sm:$0xff]
        %v426 = vld [vmem:[%s388 + $0x18] sm:$0xff]
        %v427 = vld [vmem:[%s388 + $0x20] sm:$0xff]
        %v428 = vld [vmem:[%s388 + $0x28] sm:$0xff]
        %v429 = vld [vmem:[%s388 + $0x30] sm:$0xff]
        %v430 = vld [vmem:[%s388 + $0x38] sm:$0xff]
        %v431 = vld [vmem:[%s388 + $0x40] sm:$0xff]
        %v432 = vld [vmem:[%s388 + $0x48] sm:$0xff]
        %v433 = vld [vmem:[%s388 + $0x50] sm:$0xff]
        %v434 = vld [vmem:[%s388 + $0x58] sm:$0xff]
        %v435 = vld [vmem:[%s388 + $0x60] sm:$0xff]
        %v436 = vld [vmem:[%s388 + $0x68] sm:$0xff]
        %v437 = vld [vmem:[%s388 + $0x70] sm:$0xff]
        %v438 = vld [vmem:[%s388 + $0x78] sm:$0xff]
        %v439 = vld [vmem:[%s336] sm:$0xff]
        %v440 = vld [vmem:[%s336 + $0x8] sm:$0xff]
        %v441 = vld [vmem:[%s336 + $0x10] sm:$0xff]
        %v442 = vld [vmem:[%s336 + $0x18] sm:$0xff]
        %v443 = vld [vmem:[%s336 + $0x20] sm:$0xff]
        %v444 = vld [vmem:[%s336 + $0x28] sm:$0xff]
        %v445 = vld [vmem:[%s336 + $0x30] sm:$0xff]
        %v446 = vld [vmem:[%s336 + $0x38] sm:$0xff]
        %v447 = vld [vmem:[%s336 + $0x40] sm:$0xff]
        %v448 = vld [vmem:[%s336 + $0x48] sm:$0xff]
        %v449 = vld [vmem:[%s336 + $0x50] sm:$0xff]
        %v450 = vld [vmem:[%s336 + $0x58] sm:$0xff]
        %v451 = vld [vmem:[%s336 + $0x60] sm:$0xff]
        %v452 = vld [vmem:[%s336 + $0x68] sm:$0xff]
        %v453 = vld [vmem:[%s336 + $0x70] sm:$0xff]
        %v454 = vld [vmem:[%s336 + $0x78] sm:$0xff]
        %v455 = vld [vmem:[%s336 + $0x80] sm:$0xff]
        %v456 = vld [vmem:[%s336 + $0x88] sm:$0xff]
        %v457 = vld [vmem:[%s336 + $0x90] sm:$0xff]
        %v458 = vld [vmem:[%s336 + $0x98] sm:$0xff]
        %v459 = vld [vmem:[%s336 + $0xa0] sm:$0xff]
        %v460 = vld [vmem:[%s336 + $0xa8] sm:$0xff]
        %v461 = vld [vmem:[%s336 + $0xb0] sm:$0xff]
        %v462 = vld [vmem:[%s336 + $0xb8] sm:$0xff]
        %v463 = vld [vmem:[%s336 + $0xc0] sm:$0xff]
        %v464 = vld [vmem:[%s336 + $0xc8] sm:$0xff]
        %v465 = vld [vmem:[%s336 + $0xd0] sm:$0xff]
        %v466 = vld [vmem:[%s336 + $0xd8] sm:$0xff]
        %v467 = vld [vmem:[%s336 + $0xe0] sm:$0xff]
        %v468 = vld [vmem:[%s336 + $0xe8] sm:$0xff]
        %v469 = vld [vmem:[%s336 + $0xf0] sm:$0xff]
        %v470 = vld [vmem:[%s336 + $0xf8] sm:$0xff]
        %v471 = vld [vmem:[%s394] sm:$0x3]
        %v473 = vlaneseq
        %v474 = vshrl.u32 %v473, 7
        %v475 = vsub.s32 0, %v474
        %v476 = vrot.slane %v471, %v475
        %v477 = vlaneseq
        %v478 = vshrl.u32 %v477, 7
        %v479 = vsub.s32 1, %v478
        %v480 = vrot.slane %v471, %v479
        %483 = vmatprep.subr.mxu0 %v440
        %484 = vmatpush1.msra.mxu0 %v439
        %485 = vmatprep.subr.mxu0 %v442
        %486 = vmatpush1.msra.mxu0 %v441
        %487 = vmatprep.subr.mxu0 %v444
        %488 = vmatpush1.msra.mxu0 %v443
        %489 = vmatprep.subr.mxu0 %v446
        %490 = vmatpush1.msra.mxu0 %v445
        %491 = vmatprep.subr.mxu0 %v448
        %492 = vmatpush1.msra.mxu0 %v447
        %493 = vmatprep.subr.mxu0 %v450
        %494 = vmatpush1.msra.mxu0 %v449
        %495 = vmatprep.subr.mxu0 %v452
        %496 = vmatpush1.msra.mxu0 %v451
        %497 = vmatprep.subr.mxu0 %v454
        %498 = vmatpush1.msra.mxu0 %v453
        %499 = vmatprep.subr.mxu0 %v456
        %500 = vmatpush1.msra.mxu0 %v455
        %501 = vmatprep.subr.mxu0 %v458
        %502 = vmatpush1.msra.mxu0 %v457
        %503 = vmatprep.subr.mxu0 %v460
        %504 = vmatpush1.msra.mxu0 %v459
        %505 = vmatprep.subr.mxu0 %v462
        %506 = vmatpush1.msra.mxu0 %v461
        %507 = vmatprep.subr.mxu0 %v464
        %508 = vmatpush1.msra.mxu0 %v463
        %509 = vmatprep.subr.mxu0 %v466
        %510 = vmatpush1.msra.mxu0 %v465
        %511 = vmatprep.subr.mxu0 %v468
        %512 = vmatpush1.msra.mxu0 %v467
        %513 = vmatprep.subr.mxu0 %v470
        %514 = vmatpush1.msra.mxu0 %v469
        %515 = vmatprep.subr.mxu0 0.0
        %516 = vmatpush1.msra.mxu0 0.0
        %517 = vmatprep.subr.mxu0 0.0
        %518 = vmatpush1.msra.mxu0 0.0
        %519 = vmatprep.subr.mxu0 0.0
        %520 = vmatpush1.msra.mxu0 0.0
        %521 = vmatprep.subr.mxu0 0.0
        %522 = vmatpush1.msra.mxu0 0.0
        %523 = vmatprep.subr.mxu0 0.0
        %524 = vmatpush1.msra.mxu0 0.0
        %525 = vmatprep.subr.mxu0 0.0
        %526 = vmatpush1.msra.mxu0 0.0
        %527 = vmatprep.subr.mxu0 0.0
        %528 = vmatpush1.msra.mxu0 0.0
        %529 = vmatprep.subr.mxu0 0.0
        %530 = vmatpush1.msra.mxu0 0.0
        %531 = vmatprep.subr.mxu0 0.0
        %532 = vmatpush1.msra.mxu0 0.0
        %533 = vmatprep.subr.mxu0 0.0
        %534 = vmatpush1.msra.mxu0 0.0
        %535 = vmatprep.subr.mxu0 0.0
        %536 = vmatpush1.msra.mxu0 0.0
        %537 = vmatprep.subr.mxu0 0.0
        %538 = vmatpush1.msra.mxu0 0.0
        %539 = vmatprep.subr.mxu0 0.0
        %540 = vmatpush1.msra.mxu0 0.0
        %541 = vmatprep.subr.mxu0 0.0
        %542 = vmatpush1.msra.mxu0 0.0
        %543 = vmatprep.subr.mxu0 0.0
        %544 = vmatpush1.msra.mxu0 0.0
        %545 = vmatprep.subr.mxu0 0.0
        %546 = vmatpush1.msra.mxu0 0.0
        %547 = vmatprep.mubr.f32.mxu0 0.0
        %548 = vmatmul.mubr.f32.gmra.mrb[0].mxu0 %v423
        %v549 = vpop.f32.mrb[0].mxu0
        %v550 = vadd.f32 %v476, %v549
        %v551 = vpop.f32.mrb[0].mxu0
        %v552 = vadd.f32 %v480, %v551
        %553 = vmatprep.mubr.f32.mxu0 0.0
        %554 = vmatmul.mubr.f32.gmra.mrb[0].mxu0 %v424
        %v555 = vpop.f32.mrb[0].mxu0
        %v556 = vadd.f32 %v476, %v555
        %v557 = vpop.f32.mrb[0].mxu0
        %v558 = vadd.f32 %v480, %v557
        %559 = vmatprep.mubr.f32.mxu0 0.0
        %560 = vmatmul.mubr.f32.gmra.mrb[0].mxu0 %v425
        %v561 = vpop.f32.mrb[0].mxu0
        %v562 = vadd.f32 %v476, %v561
        %v563 = vpop.f32.mrb[0].mxu0
        %v564 = vadd.f32 %v480, %v563
        %565 = vmatprep.mubr.f32.mxu0 0.0
        %566 = vmatmul.mubr.f32.gmra.mrb[0].mxu0 %v426
        %v567 = vpop.f32.mrb[0].mxu0
        %v568 = vadd.f32 %v476, %v567
        %v569 = vpop.f32.mrb[0].mxu0
        %v570 = vadd.f32 %v480, %v569
        %571 = vmatprep.mubr.f32.mxu0 0.0
        %572 = vmatmul.mubr.f32.gmra.mrb[0].mxu0 %v427
        %v573 = vpop.f32.mrb[0].mxu0
        %v574 = vadd.f32 %v476, %v573
        %v575 = vpop.f32.mrb[0].mxu0
        %v576 = vadd.f32 %v480, %v575
        %577 = vmatprep.mubr.f32.mxu0 0.0
        %578 = vmatmul.mubr.f32.gmra.mrb[0].mxu0 %v428
        %v579 = vpop.f32.mrb[0].mxu0
        %v580 = vadd.f32 %v476, %v579
        %v581 = vpop.f32.mrb[0].mxu0
        %v582 = vadd.f32 %v480, %v581
        %583 = vmatprep.mubr.f32.mxu0 0.0
        %584 = vmatmul.mubr.f32.gmra.mrb[0].mxu0 %v429
        %v585 = vpop.f32.mrb[0].mxu0
        %v586 = vadd.f32 %v476, %v585
        %v587 = vpop.f32.mrb[0].mxu0
        %v588 = vadd.f32 %v480, %v587
        %589 = vmatprep.mubr.f32.mxu0 0.0
        %590 = vmatmul.mubr.f32.gmra.mrb[0].mxu0 %v430
        %v591 = vpop.f32.mrb[0].mxu0
        %v592 = vadd.f32 %v476, %v591
        %v593 = vpop.f32.mrb[0].mxu0
        %v594 = vadd.f32 %v480, %v593
        %595 = vmatprep.mubr.f32.mxu0 0.0
        %596 = vmatmul.mubr.f32.gmra.mrb[0].mxu0 %v431
        %v597 = vpop.f32.mrb[0].mxu0
        %v598 = vadd.f32 %v476, %v597
        %v599 = vpop.f32.mrb[0].mxu0
        %v600 = vadd.f32 %v480, %v599
        %601 = vmatprep.mubr.f32.mxu0 0.0
        %602 = vmatmul.mubr.f32.gmra.mrb[0].mxu0 %v432
        %v603 = vpop.f32.mrb[0].mxu0
        %v604 = vadd.f32 %v476, %v603
        %v605 = vpop.f32.mrb[0].mxu0
        %v606 = vadd.f32 %v480, %v605
        %607 = vmatprep.mubr.f32.mxu0 0.0
        %608 = vmatmul.mubr.f32.gmra.mrb[0].mxu0 %v433
        %v609 = vpop.f32.mrb[0].mxu0
        %v610 = vadd.f32 %v476, %v609
        %v611 = vpop.f32.mrb[0].mxu0
        %v612 = vadd.f32 %v480, %v611
        %613 = vmatprep.mubr.f32.mxu0 0.0
        %614 = vmatmul.mubr.f32.gmra.mrb[0].mxu0 %v434
        %v615 = vpop.f32.mrb[0].mxu0
        %v616 = vadd.f32 %v476, %v615
        %v617 = vpop.f32.mrb[0].mxu0
        %v618 = vadd.f32 %v480, %v617
        %619 = vmatprep.mubr.f32.mxu0 0.0
        %620 = vmatmul.mubr.f32.gmra.mrb[0].mxu0 %v435
        %v621 = vpop.f32.mrb[0].mxu0
        %v622 = vadd.f32 %v476, %v621
        %v623 = vpop.f32.mrb[0].mxu0
        %v624 = vadd.f32 %v480, %v623
        %625 = vmatprep.mubr.f32.mxu0 0.0
        %626 = vmatmul.mubr.f32.gmra.mrb[0].mxu0 %v436
        %v627 = vpop.f32.mrb[0].mxu0
        %v628 = vadd.f32 %v476, %v627
        %v629 = vpop.f32.mrb[0].mxu0
        %v630 = vadd.f32 %v480, %v629
        %631 = vmatprep.mubr.f32.mxu0 0.0
        %632 = vmatmul.mubr.f32.gmra.mrb[0].mxu0 %v437
        %v633 = vpop.f32.mrb[0].mxu0
        %v634 = vadd.f32 %v476, %v633
        %v635 = vpop.f32.mrb[0].mxu0
        %v636 = vadd.f32 %v480, %v635
        %637 = vmatprep.mubr.f32.mxu0 0.0
        %638 = vmatmul.mubr.f32.gmra.mrb[0].mxu0 %v438
        %v639 = vpop.f32.mrb[0].mxu0
        %v640 = vadd.f32 %v476, %v639
        %v641 = vpop.f32.mrb[0].mxu0
        %v642 = vadd.f32 %v480, %v641
        %643 = vdwg.mxu0
        %v644 = vmax.f32 %v550, 0.0
        %v645 = vmax.f32 %v552, 0.0
        %v646 = vmax.f32 %v556, 0.0
        %v647 = vmax.f32 %v558, 0.0
        %v648 = vmax.f32 %v562, 0.0
        %v649 = vmax.f32 %v564, 0.0
        %v650 = vmax.f32 %v568, 0.0
        %v651 = vmax.f32 %v570, 0.0
        %v652 = vmax.f32 %v574, 0.0
        %v653 = vmax.f32 %v576, 0.0
        %v654 = vmax.f32 %v580, 0.0
        %v655 = vmax.f32 %v582, 0.0
        %v656 = vmax.f32 %v586, 0.0
        %v657 = vmax.f32 %v588, 0.0
        %v658 = vmax.f32 %v592, 0.0
        %v659 = vmax.f32 %v594, 0.0
        %v660 = vmax.f32 %v598, 0.0
        %v661 = vmax.f32 %v600, 0.0
        %v662 = vmax.f32 %v604, 0.0
        %v663 = vmax.f32 %v606, 0.0
        %v664 = vmax.f32 %v610, 0.0
        %v665 = vmax.f32 %v612, 0.0
        %v666 = vmax.f32 %v616, 0.0
        %v667 = vmax.f32 %v618, 0.0
        %v668 = vmax.f32 %v622, 0.0
        %v669 = vmax.f32 %v624, 0.0
        %v670 = vmax.f32 %v628, 0.0
        %v671 = vmax.f32 %v630, 0.0
        %v672 = vmax.f32 %v634, 0.0
        %v673 = vmax.f32 %v636, 0.0
        %v674 = vmax.f32 %v640, 0.0
        %v675 = vmax.f32 %v642, 0.0
        %v676 = vld [vmem:[#allocation2] sm:$0xff]
        %v677 = vld [vmem:[#allocation2 + $0x8] sm:$0xff]
        %v678 = vld [vmem:[#allocation2 + $0x10] sm:$0xff]
        %v679 = vld [vmem:[#allocation2 + $0x18] sm:$0xff]
        %v680 = vld [vmem:[#allocation2 + $0x20] sm:$0xff]
        %v681 = vld [vmem:[#allocation2 + $0x28] sm:$0xff]
        %v682 = vld [vmem:[#allocation2 + $0x30] sm:$0xff]
        %v683 = vld [vmem:[#allocation2 + $0x38] sm:$0xff]
        %v684 = vld [vmem:[#allocation2 + $0x40] sm:$0xff]
        %v685 = vld [vmem:[#allocation2 + $0x48] sm:$0xff]
        %v686 = vld [vmem:[#allocation2 + $0x50] sm:$0xff]
        %v687 = vld [vmem:[#allocation2 + $0x58] sm:$0xff]
        %v688 = vld [vmem:[#allocation2 + $0x60] sm:$0xff]
        %v689 = vld [vmem:[#allocation2 + $0x68] sm:$0xff]
        %v690 = vld [vmem:[#allocation2 + $0x70] sm:$0xff]
        %v691 = vld [vmem:[#allocation2 + $0x78] sm:$0xff]
        %v692 = vld [vmem:[%s344] sm:$0xff]
        %v693 = vld [vmem:[%s344 + $0x8] sm:$0xff]
        %v694 = vld [vmem:[%s344 + $0x10] sm:$0xff]
        %v695 = vld [vmem:[%s344 + $0x18] sm:$0xff]
        %v696 = vld [vmem:[%s344 + $0x20] sm:$0xff]
        %v697 = vld [vmem:[%s344 + $0x28] sm:$0xff]
        %v698 = vld [vmem:[%s344 + $0x30] sm:$0xff]
        %v699 = vld [vmem:[%s344 + $0x38] sm:$0xff]
        %v700 = vld [vmem:[%s344 + $0x40] sm:$0xff]
        %v701 = vld [vmem:[%s344 + $0x48] sm:$0xff]
        %v702 = vld [vmem:[%s344 + $0x50] sm:$0xff]
        %v703 = vld [vmem:[%s344 + $0x58] sm:$0xff]
        %v704 = vld [vmem:[%s344 + $0x60] sm:$0xff]
        %v705 = vld [vmem:[%s344 + $0x68] sm:$0xff]
        %v706 = vld [vmem:[%s344 + $0x70] sm:$0xff]
        %v707 = vld [vmem:[%s344 + $0x78] sm:$0xff]
        %v708 = vld [vmem:[%s344 + $0x80] sm:$0xff]
        %v709 = vld [vmem:[%s344 + $0x88] sm:$0xff]
        %v710 = vld [vmem:[%s344 + $0x90] sm:$0xff]
        %v711 = vld [vmem:[%s344 + $0x98] sm:$0xff]
        %v712 = vld [vmem:[%s344 + $0xa0] sm:$0xff]
        %v713 = vld [vmem:[%s344 + $0xa8] sm:$0xff]
        %v714 = vld [vmem:[%s344 + $0xb0] sm:$0xff]
        %v715 = vld [vmem:[%s344 + $0xb8] sm:$0xff]
        %v716 = vld [vmem:[%s344 + $0xc0] sm:$0xff]
        %v717 = vld [vmem:[%s344 + $0xc8] sm:$0xff]
        %v718 = vld [vmem:[%s344 + $0xd0] sm:$0xff]
        %v719 = vld [vmem:[%s344 + $0xd8] sm:$0xff]
        %v720 = vld [vmem:[%s344 + $0xe0] sm:$0xff]
        %v721 = vld [vmem:[%s344 + $0xe8] sm:$0xff]
        %v722 = vld [vmem:[%s344 + $0xf0] sm:$0xff]
        %v723 = vld [vmem:[%s344 + $0xf8] sm:$0xff]
        %724 = vmatprep.subr.mxu0 0.0
        %725 = vmatpush1.msra.mxu0 %v692
        %726 = vmatprep.subr.mxu0 0.0
        %727 = vmatpush1.msra.mxu0 %v693
        %728 = vmatprep.subr.mxu0 0.0
        %729 = vmatpush1.msra.mxu0 %v694
        %730 = vmatprep.subr.mxu0 0.0
        %731 = vmatpush1.msra.mxu0 %v695
        %732 = vmatprep.subr.mxu0 0.0
        %733 = vmatpush1.msra.mxu0 %v696
        %734 = vmatprep.subr.mxu0 0.0
        %735 = vmatpush1.msra.mxu0 %v697
        %736 = vmatprep.subr.mxu0 0.0
        %737 = vmatpush1.msra.mxu0 %v698
        %738 = vmatprep.subr.mxu0 0.0
        %739 = vmatpush1.msra.mxu0 %v699
        %740 = vmatprep.subr.mxu0 0.0
        %741 = vmatpush1.msra.mxu0 %v700
        %742 = vmatprep.subr.mxu0 0.0
        %743 = vmatpush1.msra.mxu0 %v701
        %744 = vmatprep.subr.mxu0 0.0
        %745 = vmatpush1.msra.mxu0 %v702
        %746 = vmatprep.subr.mxu0 0.0
        %747 = vmatpush1.msra.mxu0 %v703
        %748 = vmatprep.subr.mxu0 0.0
        %749 = vmatpush1.msra.mxu0 %v704
        %750 = vmatprep.subr.mxu0 0.0
        %751 = vmatpush1.msra.mxu0 %v705
        %752 = vmatprep.subr.mxu0 0.0
        %753 = vmatpush1.msra.mxu0 %v706
        %754 = vmatprep.subr.mxu0 0.0
        %755 = vmatpush1.msra.mxu0 %v707
        %756 = vmatprep.subr.mxu0 0.0
        %757 = vmatpush1.msra.mxu0 %v708
        %758 = vmatprep.subr.mxu0 0.0
        %759 = vmatpush1.msra.mxu0 %v709
        %760 = vmatprep.subr.mxu0 0.0
        %761 = vmatpush1.msra.mxu0 %v710
        %762 = vmatprep.subr.mxu0 0.0
        %763 = vmatpush1.msra.mxu0 %v711
        %764 = vmatprep.subr.mxu0 0.0
        %765 = vmatpush1.msra.mxu0 %v712
        %766 = vmatprep.subr.mxu0 0.0
        %767 = vmatpush1.msra.mxu0 %v713
        %768 = vmatprep.subr.mxu0 0.0
        %769 = vmatpush1.msra.mxu0 %v714
        %770 = vmatprep.subr.mxu0 0.0
        %771 = vmatpush1.msra.mxu0 %v715
        %772 = vmatprep.subr.mxu0 0.0
        %773 = vmatpush1.msra.mxu0 %v716
        %774 = vmatprep.subr.mxu0 0.0
        %775 = vmatpush1.msra.mxu0 %v717
        %776 = vmatprep.subr.mxu0 0.0
        %777 = vmatpush1.msra.mxu0 %v718
        %778 = vmatprep.subr.mxu0 0.0
        %779 = vmatpush1.msra.mxu0 %v719
        %780 = vmatprep.subr.mxu0 0.0
        %781 = vmatpush1.msra.mxu0 %v720
        %782 = vmatprep.subr.mxu0 0.0
        %783 = vmatpush1.msra.mxu0 %v721
        %784 = vmatprep.subr.mxu0 0.0
        %785 = vmatpush1.msra.mxu0 %v722
        %786 = vmatprep.subr.mxu0 0.0
        %787 = vmatpush1.msra.mxu0 %v723
        %788 = vmatprep.mubr.f32.mxu0 %v645
        %789 = vmatmul.mubr.f32.gmra.mrb[0].mxu0 %v644
        %v790 = vpop.f32.mrb[0].mxu0
        %v791 = vadd.f32 0.0, %v790
        %v792 = vpop.f32.mrb[0].mxu0
        %793 = vmatprep.mubr.f32.mxu0 %v647
        %794 = vmatmul.mubr.f32.gmra.mrb[0].mxu0 %v646
        %v795 = vpop.f32.mrb[0].mxu0
        %v796 = vadd.f32 0.0, %v795
        %v797 = vpop.f32.mrb[0].mxu0
        %798 = vmatprep.mubr.f32.mxu0 %v649
        %799 = vmatmul.mubr.f32.gmra.mrb[0].mxu0 %v648
        %v800 = vpop.f32.mrb[0].mxu0
        %v801 = vadd.f32 0.0, %v800
        %v802 = vpop.f32.mrb[0].mxu0
        %803 = vmatprep.mubr.f32.mxu0 %v651
        %804 = vmatmul.mubr.f32.gmra.mrb[0].mxu0 %v650
        %v805 = vpop.f32.mrb[0].mxu0
        %v806 = vadd.f32 0.0, %v805
        %v807 = vpop.f32.mrb[0].mxu0
        %808 = vmatprep.mubr.f32.mxu0 %v653
        %809 = vmatmul.mubr.f32.gmra.mrb[0].mxu0 %v652
        %v810 = vpop.f32.mrb[0].mxu0
        %v811 = vadd.f32 0.0, %v810
        %v812 = vpop.f32.mrb[0].mxu0
        %813 = vmatprep.mubr.f32.mxu0 %v655
        %814 = vmatmul.mubr.f32.gmra.mrb[0].mxu0 %v654
        %v815 = vpop.f32.mrb[0].mxu0
        %v816 = vadd.f32 0.0, %v815
        %v817 = vpop.f32.mrb[0].mxu0
        %818 = vmatprep.mubr.f32.mxu0 %v657
        %819 = vmatmul.mubr.f32.gmra.mrb[0].mxu0 %v656
        %v820 = vpop.f32.mrb[0].mxu0
        %v821 = vadd.f32 0.0, %v820
        %v822 = vpop.f32.mrb[0].mxu0
        %823 = vmatprep.mubr.f32.mxu0 %v659
        %824 = vmatmul.mubr.f32.gmra.mrb[0].mxu0 %v658
        %v825 = vpop.f32.mrb[0].mxu0
        %v826 = vadd.f32 0.0, %v825
        %v827 = vpop.f32.mrb[0].mxu0
        %828 = vmatprep.mubr.f32.mxu0 %v661
        %829 = vmatmul.mubr.f32.gmra.mrb[0].mxu0 %v660
        %v830 = vpop.f32.mrb[0].mxu0
        %v831 = vadd.f32 0.0, %v830
        %v832 = vpop.f32.mrb[0].mxu0
        %833 = vmatprep.mubr.f32.mxu0 %v663
        %834 = vmatmul.mubr.f32.gmra.mrb[0].mxu0 %v662
        %v835 = vpop.f32.mrb[0].mxu0
        %v836 = vadd.f32 0.0, %v835
        %v837 = vpop.f32.mrb[0].mxu0
        %838 = vmatprep.mubr.f32.mxu0 %v665
        %839 = vmatmul.mubr.f32.gmra.mrb[0].mxu0 %v664
        %v840 = vpop.f32.mrb[0].mxu0
        %v841 = vadd.f32 0.0, %v840
        %v842 = vpop.f32.mrb[0].mxu0
        %843 = vmatprep.mubr.f32.mxu0 %v667
        %844 = vmatmul.mubr.f32.gmra.mrb[0].mxu0 %v666
        %v845 = vpop.f32.mrb[0].mxu0
        %v846 = vadd.f32 0.0, %v845
        %v847 = vpop.f32.mrb[0].mxu0
        %848 = vmatprep.mubr.f32.mxu0 %v669
        %849 = vmatmul.mubr.f32.gmra.mrb[0].mxu0 %v668
        %v850 = vpop.f32.mrb[0].mxu0
        %v851 = vadd.f32 0.0, %v850
        %v852 = vpop.f32.mrb[0].mxu0
        %853 = vmatprep.mubr.f32.mxu0 %v671
        %854 = vmatmul.mubr.f32.gmra.mrb[0].mxu0 %v670
        %v855 = vpop.f32.mrb[0].mxu0
        %v856 = vadd.f32 0.0, %v855
        %v857 = vpop.f32.mrb[0].mxu0
        %858 = vmatprep.mubr.f32.mxu0 %v673
        %859 = vmatmul.mubr.f32.gmra.mrb[0].mxu0 %v672
        %v860 = vpop.f32.mrb[0].mxu0
        %v861 = vadd.f32 0.0, %v860
        %v862 = vpop.f32.mrb[0].mxu0
        %863 = vmatprep.mubr.f32.mxu0 %v675
        %864 = vmatmul.mubr.f32.gmra.mrb[0].mxu0 %v674
        %v865 = vpop.f32.mrb[0].mxu0
        %v866 = vadd.f32 0.0, %v865
        %v867 = vpop.f32.mrb[0].mxu0
        %868 = vdwg.mxu0
        %v869 = vadd.f32 %v676, %v791
        %v870 = vadd.f32 %v677, %v796
        %v871 = vadd.f32 %v678, %v801
        %v872 = vadd.f32 %v679, %v806
        %v873 = vadd.f32 %v680, %v811
        %v874 = vadd.f32 %v681, %v816
        %v875 = vadd.f32 %v682, %v821
        %v876 = vadd.f32 %v683, %v826
        %v877 = vadd.f32 %v684, %v831
        %v878 = vadd.f32 %v685, %v836
        %v879 = vadd.f32 %v686, %v841
        %v880 = vadd.f32 %v687, %v846
        %v881 = vadd.f32 %v688, %v851
        %v882 = vadd.f32 %v689, %v856
        %v883 = vadd.f32 %v690, %v861
        %v884 = vadd.f32 %v691, %v866
        %885 = vst [vmem:[#allocation2] sm:$0xff] %v869
        %886 = vst [vmem:[#allocation2 + $0x8] sm:$0xff] %v870
        %887 = vst [vmem:[#allocation2 + $0x10] sm:$0xff] %v871
        %888 = vst [vmem:[#allocation2 + $0x18] sm:$0xff] %v872
        %889 = vst [vmem:[#allocation2 + $0x20] sm:$0xff] %v873
        %890 = vst [vmem:[#allocation2 + $0x28] sm:$0xff] %v874
        %891 = vst [vmem:[#allocation2 + $0x30] sm:$0xff] %v875
        %892 = vst [vmem:[#allocation2 + $0x38] sm:$0xff] %v876
        %893 = vst [vmem:[#allocation2 + $0x40] sm:$0xff] %v877
        %894 = vst [vmem:[#allocation2 + $0x48] sm:$0xff] %v878
        %895 = vst [vmem:[#allocation2 + $0x50] sm:$0xff] %v879
        %896 = vst [vmem:[#allocation2 + $0x58] sm:$0xff] %v880
        %897 = vst [vmem:[#allocation2 + $0x60] sm:$0xff] %v881
        %898 = vst [vmem:[#allocation2 + $0x68] sm:$0xff] %v882
        %899 = vst [vmem:[#allocation2 + $0x70] sm:$0xff] %v883
        %900 = vst [vmem:[#allocation2 + $0x78] sm:$0xff] %v884
        %p901 = scmp.eq.s32.totalorder %s24, 1
        // Predicated region
        $region72: #{mlp_forward.1} parent=58 // pred_check
          %p902 = pneg %p901
        $region73: #{mlp_forward.1} parent=58 // pred_check_branch
          %904 = sbr.rel (%p902) target = $region75
        $region74: #{mlp_forward.1} parent=58 // pred_region
          %v905 = vld [vmem:[#allocation2] sm:$0xff]
          %v906 = vld [vmem:[#allocation2 + $0x8] sm:$0xff]
          %v907 = vld [vmem:[#allocation2 + $0x10] sm:$0xff]
          %v908 = vld [vmem:[#allocation2 + $0x18] sm:$0xff]
          %v909 = vld [vmem:[#allocation2 + $0x20] sm:$0xff]
          %v910 = vld [vmem:[#allocation2 + $0x28] sm:$0xff]
          %v911 = vld [vmem:[#allocation2 + $0x30] sm:$0xff]
          %v912 = vld [vmem:[#allocation2 + $0x38] sm:$0xff]
          %v913 = vld [vmem:[#allocation2 + $0x40] sm:$0xff]
          %v914 = vld [vmem:[#allocation2 + $0x48] sm:$0xff]
          %v915 = vld [vmem:[#allocation2 + $0x50] sm:$0xff]
          %v916 = vld [vmem:[#allocation2 + $0x58] sm:$0xff]
          %v917 = vld [vmem:[#allocation2 + $0x60] sm:$0xff]
          %v918 = vld [vmem:[#allocation2 + $0x68] sm:$0xff]
          %v919 = vld [vmem:[#allocation2 + $0x70] sm:$0xff]
          %v920 = vld [vmem:[#allocation2 + $0x78] sm:$0xff]
          %v921 = vld [vmem:[%s4] sm:$0x1]
          %v923 = vlaneseq
          %v924 = vshrl.u32 %v923, 7
          %v925 = vsub.s32 0, %v924
          %v926 = vrot.slane %v921, %v925
          %v928 = vadd.f32 %v905, %v926
          %v929 = vadd.f32 %v906, %v926
          %v930 = vadd.f32 %v907, %v926
          %v931 = vadd.f32 %v908, %v926
          %v932 = vadd.f32 %v909, %v926
          %v933 = vadd.f32 %v910, %v926
          %v934 = vadd.f32 %v911, %v926
          %v935 = vadd.f32 %v912, %v926
          %v936 = vadd.f32 %v913, %v926
          %v937 = vadd.f32 %v914, %v926
          %v938 = vadd.f32 %v915, %v926
          %v939 = vadd.f32 %v916, %v926
          %v940 = vadd.f32 %v917, %v926
          %v941 = vadd.f32 %v918, %v926
          %v942 = vadd.f32 %v919, %v926
          %v943 = vadd.f32 %v920, %v926
          %944 = vst [vmem:[%s401] sm:$0xff] %v928
          %945 = vst [vmem:[%s401 + $0x8] sm:$0xff] %v929
          %946 = vst [vmem:[%s401 + $0x10] sm:$0xff] %v930
          %947 = vst [vmem:[%s401 + $0x18] sm:$0xff] %v931
          %948 = vst [vmem:[%s401 + $0x20] sm:$0xff] %v932
          %949 = vst [vmem:[%s401 + $0x28] sm:$0xff] %v933
          %950 = vst [vmem:[%s401 + $0x30] sm:$0xff] %v934
          %951 = vst [vmem:[%s401 + $0x38] sm:$0xff] %v935
          %952 = vst [vmem:[%s401 + $0x40] sm:$0xff] %v936
          %953 = vst [vmem:[%s401 + $0x48] sm:$0xff] %v937
          %954 = vst [vmem:[%s401 + $0x50] sm:$0xff] %v938
          %955 = vst [vmem:[%s401 + $0x58] sm:$0xff] %v939
          %956 = vst [vmem:[%s401 + $0x60] sm:$0xff] %v940
          %957 = vst [vmem:[%s401 + $0x68] sm:$0xff] %v941
          %958 = vst [vmem:[%s401 + $0x70] sm:$0xff] %v942
          %959 = vst [vmem:[%s401 + $0x78] sm:$0xff] %v943
        $region75: #{mlp_forward.1} parent=58 // pred_fallthru
          _
        %s960 = smul.u32 16, %s23
        %p961 = scmp.lt.s32.totalorder %s960, 31
        %s962 = scalar_select %p961, %s960, 31
        %s963 = smul.addr %s962, 8
        %s964 = scalar_lea.vmem %s5, %s963
        // Predicated region
        $region76: #{mlp_forward.1} parent=58 // pred_check
          %p965 = pneg %p174
        $region77: #{mlp_forward.1} parent=58 // pred_check_branch
          %967 = sbr.rel (%p965) target = $region79
        $region78: #{mlp_forward.1} parent=58 // pred_region
          %s968 = smul.u32 16, %s23
        $region79: #{mlp_forward.1} parent=58 // pred_fallthru
          _
      $region59: #{mlp_forward.1} parent=5 // pred_fallthru
        _
      %p969 = scmp.le.s32.totalorder 2, %s14
      // Predicated region
      $region80: #{mlp_forward.1} parent=5 // pred_check
        %p970 = pneg %p969
      $region81: #{mlp_forward.1} parent=5 // pred_check_branch
        %972 = sbr.rel (%p970) target = $region83
      $region82: #{mlp_forward.1} parent=5 // pred_region
        %s973 = ssub.s32 %s14, 2
        // Predicated region
        $region84: #{mlp_forward.1} parent=82 // pred_check
          %p974 = pneg %p180
        $region85: #{mlp_forward.1} parent=82 // pred_check_branch
          %976 = sbr.rel (%p974) target = $region87
        $region86: #{mlp_forward.1} parent=82 // pred_region
          %s977 = smul.u32 16, %s25
          %p978 = scmp.lt.s32.totalorder %s977, 31
          %s979 = scalar_select %p978, %s977, 31
          %s980 = smul.addr %s979, 8
          %s981 = scalar_lea.vmem %s5, %s980
        $region87: #{mlp_forward.1} parent=82 // pred_fallthru
          _
      $region83: #{mlp_forward.1} parent=5 // pred_fallthru
        _
    $region6: #{mlp_forward.1} parent=1 // loop_footer
      %s18 = sadd.s32 1, %s14
    $region7: #{mlp_forward.1} parent=1 // loop_footer_branch
      %13 = sbr.rel target = $region3
    $region8: #{mlp_forward.1} parent=1 // loop_exit
      _
    %982 = vsyncpa [#allocation5], 1
    %s983 = scalar_lea.sflag [#allocation5], 1
    %984 = vsyncpa %s983, 1

</llo_original>
